<compile_context>
chip_gen: v6e
topology: v6e:2x2x1
jax: 0.10.0
libtpu: 0.0.40
codegen_flags: <defaults>
</compile_context>

<pallas_src>
import functools
from typing import NamedTuple

import jax
import jax.numpy as jnp
from jax.experimental import pallas as pl
from jax.experimental.pallas import tpu as pltpu


# ----------------------------------------------------------------------------- helpers
def _round_up(x: int, m: int) -> int:
    return ((x + m - 1) // m) * m


def _largest_aligned_divisor(hidden: int, target: int) -> int:
    """Largest divisor of `hidden` that is a multiple of 128 and <= target.
    Falls back to `hidden` itself for small / non-128-aligned hidden dims."""
    if hidden <= target:
        return hidden
    t = (target // 128) * 128
    while t >= 128:
        if hidden % t == 0:
            return t
        t -= 128
    return hidden


def _gen_defaults():
    """Generation-aware defaults (tm, vmem limit, megacore hint)."""
    vmem_cap = None
    try:
        info = pltpu.get_tpu_info()
        vmem_cap = getattr(info, "vmem_capacity_bytes", None)
    except Exception:
        vmem_cap = None
    if vmem_cap is None:
        # Unknown: be conservative (works on every generation).
        vmem_cap = 64 * 1024 * 1024
    vmem_cap = int(vmem_cap)
    if vmem_cap <= 64 * 1024 * 1024:
        # v7x-like: 64 MiB VMEM per TensorCore, 2 TCs share the parallel axis.
        return {"tm": 256,
                "vmem_limit": min(52 * 1024 * 1024, int(vmem_cap * 0.8)),
                "two_cores": True}
    # v5e / v6e-like: 128 MiB VMEM, single TensorCore.
    return {"tm": 512,
            "vmem_limit": min(96 * 1024 * 1024, int(vmem_cap * 0.75)),
            "two_cores": False}


def _choose_th(hidden: int, tc: int, dim: int, tm: int, dt_bytes: int,
               out_bytes: int, budget: int, cap=None) -> int:
    """Largest tc-multiple divisor of hidden whose VMEM footprint fits `budget`."""
    cands = [t for t in range(tc, hidden + 1, tc) if hidden % t == 0]
    if cap is not None:
        capped = [t for t in cands if t <= cap]
        cands = capped or cands[:1]
    best = cands[0]
    for t in cands:
        nh = hidden // t
        bufw = 1 if nh == 1 else 2          # Buffered(1) when grid-invariant
        fp = (2 * tm * dim * dt_bytes        # x tile, double-buffered
              + 2 * tm * dim * out_bytes     # out tile, double-buffered
              + bufw * dim * 2 * t * dt_bytes  # fused wuv block
              + bufw * t * dim * dt_bytes      # wo block
              + tm * dim * 4                   # f32 accumulator scratch
              + tm * 3 * tc * 4)               # live uv/g intermediates
        if fp <= budget and t > best:
            best = t
    return best


# ----------------------------------------------------------------------------- params
class MLPParams(NamedTuple):
    wuv: jax.Array   # [dim, 2*hidden]; per tc-wide granule: [Wu_sub | Wv_sub]
    wo: jax.Array    # [hidden, dim]
    tc: int          # interleave granularity == in-kernel sub-chunk width
    dim: int
    hidden: int


def prepare_mlp_params(wu_t, wv_t, wo_t, *, compute_dtype="auto", sub_tile=512):
    """Pre-interleave Wu/Wv and pre-cast weights once (hoist out of the hot path).

    wu_t / wv_t: [dim, hidden]   (i.e. nn.Linear weight transposed)
    wo_t:        [hidden, dim]
    compute_dtype: "auto" -> bf16 if weights are f32 (single-pass MXU), else keep.
    """
    dim, hidden = wu_t.shape
    assert wv_t.shape == (dim, hidden) and wo_t.shape == (hidden, dim)

    if compute_dtype in (None, "auto"):
        cdt = jnp.bfloat16 if wu_t.dtype == jnp.float32 else wu_t.dtype
    else:
        cdt = compute_dtype

    tc = _largest_aligned_divisor(hidden, sub_tile)
    n_gran = hidden // tc
    # Column layout: [u_0(tc) | v_0(tc) | u_1(tc) | v_1(tc) | ...]
    wuv = jnp.concatenate(
        [wu_t.reshape(dim, n_gran, 1, tc), wv_t.reshape(dim, n_gran, 1, tc)],
        axis=2,
    ).reshape(dim, 2 * hidden).astype(cdt)

    return MLPParams(wuv=wuv, wo=wo_t.astype(cdt), tc=tc, dim=dim, hidden=hidden)


# ----------------------------------------------------------------------------- kernel
def mlp_kernel(x_ref, wuv_ref, wo_ref, o_ref, acc_ref, *, tc: int, n_sub: int):
    # x_ref:   (tm, dim)            row tile of the flattened input
    # wuv_ref: (dim, 2*th)          n_sub interleaved [Wu_sub | Wv_sub] granules
    # wo_ref:  (th, dim)            o-proj weight rows for this hidden tile
    # o_ref:   (tm, dim)            output tile (written on the last hidden step)
    # acc_ref: (tm, dim) f32        running o-proj accumulator
    h_idx = pl.program_id(1)

    @pl.when(h_idx == 0)
    def _():
        acc_ref[...] = jnp.zeros_like(acc_ref)

    x = x_ref[...]

    # Statically unrolled sub-chunking over the hidden tile: only one (tm, 2*tc)
    # uv slab + one (tm, tc) gate are live at a time; the acc_ref RMW at the end
    # of each sub-chunk bounds the live intermediates.
    for c in range(n_sub):
        uv = jnp.dot(x, wuv_ref[:, c * 2 * tc:(c + 1) * 2 * tc],
                     preferred_element_type=jnp.float32)        # (tm, 2*tc) f32
        u = uv[:, :tc]
        v = uv[:, tc:]
        # SwiGLU gate in f32: u * silu(v) = u * v * sigmoid(v)  (sigmoid -> EUP).
        g = u * (v * jax.nn.sigmoid(v))
        acc_ref[...] += jnp.dot(g.astype(wo_ref.dtype),
                                wo_ref[c * tc:(c + 1) * tc, :],
                                preferred_element_type=jnp.float32)

    @pl.when(h_idx == pl.num_programs(1) - 1)
    def _():
        o_ref[...] = acc_ref[...].astype(o_ref.dtype)


# ----------------------------------------------------------------------------- wrapper
def mlp_pallas(x, params: MLPParams, *, tm=None, vmem_limit_bytes=None,
               max_hidden_tile=None):
    """x: [B, S, dim]; params: from prepare_mlp_params. Eval-mode (dropout = id)."""
    B, S, dim = x.shape
    assert dim == params.dim
    hidden, tc = params.hidden, params.tc
    cdt = params.wuv.dtype
    out_dtype = x.dtype
    dt_bytes = jnp.dtype(cdt).itemsize
    out_bytes = jnp.dtype(out_dtype).itemsize

    defaults = _gen_defaults()
    if tm is None:
        tm = defaults["tm"]
    if vmem_limit_bytes is None:
        vmem_limit_bytes = defaults["vmem_limit"]

    # ---- Row tiling: shrink for tiny M, keep >=2 tiles on 2-TC chips, pad ragged M.
    M = B * S
    tm_eff = min(tm, _round_up(M, 8))
    if defaults["two_cores"] and M > 8:
        tm_eff = min(tm_eff, _round_up(-(-M // 2), 8))   # >=2 tiles for the 2 TCs
    M_pad = _round_up(M, tm_eff)

    x2 = x.reshape(M, dim)
    if M_pad != M:
        x2 = jnp.pad(x2, ((0, M_pad - M), (0, 0)))
    if x2.dtype != cdt:
        x2 = x2.astype(cdt)

    # ---- VMEM-aware hidden-tile choice.
    budget = int(vmem_limit_bytes * 0.85)
    th = _choose_th(hidden, tc, dim, tm_eff, dt_bytes, out_bytes, budget,
                    cap=max_hidden_tile)
    nh = hidden // th
    n_sub = th // tc

    # Grid-invariant weight blocks (nh == 1) need only one buffer.
    weight_buffering = {"pipeline_mode": pl.Buffered(1)} if nh == 1 else {}

    kernel = functools.partial(mlp_kernel, tc=tc, n_sub=n_sub)

    n_row_tiles = M_pad // tm_eff
    weight_bytes = (params.wuv.size + params.wo.size) * dt_bytes
    cost = pl.CostEstimate(
        flops=6 * M_pad * dim * hidden,
        transcendentals=M_pad * hidden,
        bytes_accessed=int(x2.size * dt_bytes + M_pad * dim * out_bytes
                           + weight_bytes * (n_row_tiles if nh > 1 else 1)),
    )

    out2 = pl.pallas_call(
        kernel,
        out_shape=jax.ShapeDtypeStruct((M_pad, dim), out_dtype),
        grid_spec=pltpu.PrefetchScalarGridSpec(
            num_scalar_prefetch=0,
            grid=(n_row_tiles, nh),
            in_specs=[
                pl.BlockSpec((tm_eff, dim), lambda i, h: (i, 0)),
                pl.BlockSpec((dim, 2 * th), lambda i, h: (0, h), **weight_buffering),
                pl.BlockSpec((th, dim), lambda i, h: (h, 0), **weight_buffering),
            ],
            out_specs=pl.BlockSpec((tm_eff, dim), lambda i, h: (i, 0)),
            scratch_shapes=[pltpu.VMEM((tm_eff, dim), jnp.float32)],
        ),
        compiler_params=pltpu.CompilerParams(
            dimension_semantics=("parallel", "arbitrary"),
            vmem_limit_bytes=int(vmem_limit_bytes),
        ),
        cost_estimate=cost,
    )(x2, params.wuv, params.wo)

    return out2[:M].reshape(B, S, dim)


def reference_mlp(x, wu_t, wv_t, wo_t):
    u = x @ wu_t
    v = x @ wv_t
    return (u * (v * jax.nn.sigmoid(v))) @ wo_t


# ----------------------------------------------------------------------------- tests
if __name__ == "__main__":
    key = jax.random.PRNGKey(0)

    # ---- Test 1: module-consistent small shapes (B=2, S=8, dim=32, hidden=64), f32 exact.
    B, S, dim, hidden = 2, 8, 32, 64
    kx, ku, kv, ko, key = jax.random.split(key, 5)
    x = jax.random.normal(kx, (B, S, dim), dtype=jnp.float32)
    # PyTorch nn.Linear weights are [out, in]; transpose to [in, out] for the kernel.
    wu = jax.random.normal(ku, (hidden, dim), dtype=jnp.float32) * (1.0 / dim ** 0.5)
    wv = jax.random.normal(kv, (hidden, dim), dtype=jnp.float32) * (1.0 / dim ** 0.5)
    wo = jax.random.normal(ko, (dim, hidden), dtype=jnp.float32) * (1.0 / hidden ** 0.5)

    params_f32 = prepare_mlp_params(wu.T, wv.T, wo.T, compute_dtype=jnp.float32)
    out = jax.block_until_ready(mlp_pallas(x, params_f32))
    ref = reference_mlp(x, wu.T, wv.T, wo.T)
    assert out.shape == (B, S, dim)
    assert jnp.allclose(out, ref, atol=1e-4, rtol=1e-4), "f32 mismatch vs reference"

    # ---- Test 2: default "auto" compute dtype (bf16 MXU, f32 accumulation), loose tol.
    params_auto = prepare_mlp_params(wu.T, wv.T, wo.T)   # auto -> bf16
    out_bf16 = jax.block_until_ready(mlp_pallas(x, params_auto))
    assert jnp.allclose(out_bf16.astype(jnp.float32), ref, atol=0.3, rtol=0.1), \
        "bf16 mismatch vs reference"

    # ---- Test 3: hidden tiling (nh > 1) + in-kernel sub-chunking (n_sub > 1) + ragged M.
    B2, S2, dim2, hidden2 = 2, 7, 128, 512
    kx2, ku2, kv2, ko2, key = jax.random.split(key, 5)
    x2 = jax.random.normal(kx2, (B2, S2, dim2), dtype=jnp.float32)
    wu2 = jax.random.normal(ku2, (hidden2, dim2), dtype=jnp.float32) * (1.0 / dim2 ** 0.5)
    wv2 = jax.random.normal(kv2, (hidden2, dim2), dtype=jnp.float32) * (1.0 / dim2 ** 0.5)
    wo2 = jax.random.normal(ko2, (dim2, hidden2), dtype=jnp.float32) * (1.0 / hidden2 ** 0.5)

    params3 = prepare_mlp_params(wu2.T, wv2.T, wo2.T,
                                 compute_dtype=jnp.float32, sub_tile=128)
    out3 = jax.block_until_ready(mlp_pallas(x2, params3, max_hidden_tile=256))
    ref3 = reference_mlp(x2, wu2.T, wv2.T, wo2.T)
    assert out3.shape == (B2, S2, dim2)
    assert jnp.allclose(out3, ref3, atol=1e-3, rtol=1e-3), \
        "tiled/ragged mismatch vs reference"

    print("KERNEL_OK")
</pallas_src>

<mosaic_0001>
module attributes {stable_mosaic.version = 11 : i64} {
  func.func @mlp_kernel(%arg0: i32, %arg1: i32, %arg2: memref<8x32xf32, #tpu.memory_space<vmem>>, %arg3: memref<32x128xf32, #tpu.memory_space<vmem>>, %arg4: memref<64x32xf32, #tpu.memory_space<vmem>>, %arg5: memref<8x32xf32, #tpu.memory_space<vmem>>, %arg6: memref<8x32xf32, #tpu.memory_space<vmem>>) attributes {dimension_semantics = [#tpu.dimension_semantics<parallel>, #tpu.dimension_semantics<arbitrary>], iteration_bounds = array<i64: 2, 1>, scalar_prefetch = 0 : i64, scratch_operands = 1 : i64, tpu.core_type = #tpu.core_type<tc>, window_params = [{transform_indices = @transform_0, window_bounds = array<i64: 8, 32>}, {pipeline_mode = #tpu.pipeline_mode<synchronous>, transform_indices = @transform_1, window_bounds = array<i64: 32, 128>}, {pipeline_mode = #tpu.pipeline_mode<synchronous>, transform_indices = @transform_2, window_bounds = array<i64: 64, 32>}, {transform_indices = @transform_3, window_bounds = array<i64: 8, 32>}]} {
    %c0_i32 = arith.constant 0 : i32
    %0 = arith.cmpi eq, %arg1, %c0_i32 : i32
    %1 = arith.extui %0 : i1 to i32
    %c0_i32_0 = arith.constant 0 : i32
    %2 = arith.cmpi ne, %1, %c0_i32_0 : i32
    scf.if %2 {
      %cst_14 = arith.constant 0.000000e+00 : f32
      %23 = vector.broadcast %cst_14 : f32 to vector<8x32xf32>
      %c0_15 = arith.constant 0 : index
      %c0_16 = arith.constant 0 : index
      %24 = vector.load %arg6[%c0_15, %c0_16] : memref<8x32xf32, #tpu.memory_space<vmem>>, vector<8x32xf32>
      tpu.vector_store %arg6[%c0_15, %c0_16], %23 {strides = array<i32>} : memref<8x32xf32, #tpu.memory_space<vmem>>, vector<8x32xf32>,
    } else {
    }
    %c0 = arith.constant 0 : index
    %c0_1 = arith.constant 0 : index
    %3 = vector.load %arg2[%c0, %c0_1] : memref<8x32xf32, #tpu.memory_space<vmem>>, vector<8x32xf32>
    %c0_2 = arith.constant 0 : index
    %c0_3 = arith.constant 0 : index
    %4 = vector.load %arg3[%c0_2, %c0_3] : memref<32x128xf32, #tpu.memory_space<vmem>>, vector<32x128xf32>
    %cst = arith.constant dense<0.000000e+00> : vector<8x128xf32>
    %5 = tpu.matmul %3, %4, %cst {dimension_numbers = #tpu.dot_dimension_numbers<[1], [0], [0], [1], [0, 0, 1, 1], [], []>} : vector<8x32xf32>, vector<32x128xf32>, vector<8x128xf32> -> vector<8x128xf32>
    %6 = vector.extract_strided_slice %5 {offsets = [0, 0], sizes = [8, 64], strides = [1, 1]} : vector<8x128xf32> to vector<8x64xf32>
    %7 = vector.extract_strided_slice %5 {offsets = [0, 64], sizes = [8, 64], strides = [1, 1]} : vector<8x128xf32> to vector<8x64xf32>
    %8 = arith.negf %7 : vector<8x64xf32>
    %9 = math.exp %8 : vector<8x64xf32>
    %cst_4 = arith.constant 1.000000e+00 : f32
    %10 = vector.broadcast %cst_4 : f32 to vector<8x64xf32>
    %11 = arith.addf %10, %9 : vector<8x64xf32>
    %12 = arith.divf %10, %11 : vector<8x64xf32>
    %13 = arith.mulf %7, %12 : vector<8x64xf32>
    %14 = arith.mulf %6, %13 : vector<8x64xf32>
    %c0_5 = arith.constant 0 : index
    %c0_6 = arith.constant 0 : index
    %15 = vector.load %arg6[%c0_5, %c0_6] : memref<8x32xf32, #tpu.memory_space<vmem>>, vector<8x32xf32>
    %c0_7 = arith.constant 0 : index
    %c0_8 = arith.constant 0 : index
    %16 = vector.load %arg4[%c0_7, %c0_8] : memref<64x32xf32, #tpu.memory_space<vmem>>, vector<64x32xf32>
    %cst_9 = arith.constant dense<0.000000e+00> : vector<8x32xf32>
    %17 = tpu.matmul %14, %16, %cst_9 {dimension_numbers = #tpu.dot_dimension_numbers<[1], [0], [0], [1], [0, 0, 1, 1], [], []>} : vector<8x64xf32>, vector<64x32xf32>, vector<8x32xf32> -> vector<8x32xf32>
    %18 = arith.addf %15, %17 : vector<8x32xf32>
    %c0_10 = arith.constant 0 : index
    %c0_11 = arith.constant 0 : index
    %19 = vector.load %arg6[%c0_10, %c0_11] : memref<8x32xf32, #tpu.memory_space<vmem>>, vector<8x32xf32>
    tpu.vector_store %arg6[%c0_10, %c0_11], %18 {strides = array<i32>} : memref<8x32xf32, #tpu.memory_space<vmem>>, vector<8x32xf32>,
    %c0_i32_12 = arith.constant 0 : i32
    %20 = arith.cmpi eq, %arg1, %c0_i32_12 : i32
    %21 = arith.extui %20 : i1 to i32
    %c0_i32_13 = arith.constant 0 : i32
    %22 = arith.cmpi ne, %21, %c0_i32_13 : i32
    scf.if %22 {
      %c0_14 = arith.constant 0 : index
      %c0_15 = arith.constant 0 : index
      %23 = vector.load %arg6[%c0_14, %c0_15] : memref<8x32xf32, #tpu.memory_space<vmem>>, vector<8x32xf32>
      %c0_16 = arith.constant 0 : index
      %c0_17 = arith.constant 0 : index
      %24 = vector.load %arg5[%c0_16, %c0_17] : memref<8x32xf32, #tpu.memory_space<vmem>>, vector<8x32xf32>
      tpu.vector_store %arg5[%c0_16, %c0_17], %23 {strides = array<i32>} : memref<8x32xf32, #tpu.memory_space<vmem>>, vector<8x32xf32>,
    } else {
    }
    return
  }
  func.func @transform_0(%arg0: i32, %arg1: i32) -> (i32, i32) {
    %c0_i32 = arith.constant 0 : i32
    %c0_i32_0 = arith.constant 0 : i32
    return %arg0, %c0_i32 : i32, i32
  }
  func.func @transform_1(%arg0: i32, %arg1: i32) -> (i32, i32) {
    %c0_i32 = arith.constant 0 : i32
    %c0_i32_0 = arith.constant 0 : i32
    return %c0_i32, %arg1 : i32, i32
  }
  func.func @transform_2(%arg0: i32, %arg1: i32) -> (i32, i32) {
    %c0_i32 = arith.constant 0 : i32
    %c0_i32_0 = arith.constant 0 : i32
    return %arg1, %c0_i32 : i32, i32
  }
  func.func @transform_3(%arg0: i32, %arg1: i32) -> (i32, i32) {
    %c0_i32 = arith.constant 0 : i32
    %c0_i32_0 = arith.constant 0 : i32
    return %arg0, %c0_i32 : i32, i32
  }
}

</mosaic_0001>

<llo_original>
// kernel: tpu_custom_call.1
$region0: #{tpu_custom_call.1}
  #allocation0 [shape = 'u32[]', space=smem, size = 0x4, offset = 0x4, fixed_abs, tag = 'smem constant byte address 0x4 - core index']
  #allocation1 [shape = 'u32[144,128]{1,0:T(1,128)}', space=vmem, size = 0x12000, scoped, tag = 'internal scratch']
  #allocation2 [shape = 'f32[8,32]{1,0:T(8,128)}', space=vmem, size = 0x1000, scoped, tag = 'scratch operand']
  %s0 = inlined_call_operand.vmem [shape: f32[16,32], index: 0, kind: input, shape index: {}]
  %s1 = inlined_call_operand.vmem [shape: f32[32,128], index: 1, kind: input, shape index: {}]
  %s2 = inlined_call_operand.vmem [shape: f32[64,32], index: 2, kind: input, shape index: {}]
  %s3 = inlined_call_operand.hbm [shape: f32[16,32], index: 3, kind: output, shape index: {}]
  %s4 = sld [smem:[#allocation0]]
  $region53: #{tpu_custom_call.1} parent=0
    _
  %s6 = ssub.s32 1, %s4
  %s7 = scalar_select 0, %s6, %s4
  $region1: #{tpu_custom_call.1} parent=0
    #allocation3 [shape = 'u8[8192]{0}', space=vmem, size = 0x2000, scoped, tag = 'output window, operand 0']
    #allocation4 [shape = 's32[2]{0}', space=sflag, size = 0x8, scoped, tag = 'scoped memory for tpu_custom_call.1']
    %8 = vsyncpa [#allocation4], 0
    %s9 = scalar_lea.sflag [#allocation4], 1
    %10 = vsyncpa %s9, 0
    loop: start=0, step=1, limit=4
    $region2: #{tpu_custom_call.1} parent=1 // loop_pre_header
      _
    $region3: #{tpu_custom_call.1} parent=1 // loop_header
      %s12 = sphi 0, %s16
      %p13 = scmp.ge.s32.totalorder %s12, 4
      %s19 = sphi 0, %s31
      %s20 = sphi 0, %s27
      %s21 = sphi 0, %s19
      %s22 = sphi 0, %s20
      %s23 = sphi 0, %s21
      %s24 = sphi 0, %s22
      %s34 = sphi 0, %s36
      %s37 = sphi 0, %s34
      %s38 = sphi 0, %s37
      %s54 = sphi 0, %s38
      %s60 = sphi 0, %s62
      %s63 = sphi 0, %s60
      %s64 = sphi 0, %s63
      %s80 = sphi 0, %s64
      %s86 = sphi 0, %s88
      %s89 = sphi 0, %s86
      %s90 = sphi 0, %s89
      %s106 = sphi 0, %s90
      %s112 = sphi 0, %s114
      %s115 = sphi 0, %s112
      %s116 = sphi 0, %s115
      %s132 = sphi 0, %s116
    $region4: #{tpu_custom_call.1} parent=1 // loop_header_branch
      %15 = sbr.rel (%p13) target = $region8
    $region5: #{tpu_custom_call.1} parent=1 // loop_body
      %s17 = ssub.s32 %s12, 1
      %s18 = ssub.s32 %s12, 2
      %s25 = sadd.s32 1, %s20
      %p26 = scmp.ge.s32.totalorder %s25, 1
      %s27 = scalar_select %p26, 0, %s25
      %s28 = sadd.s32 1, %s19
      %s29 = scalar_select %p26, %s28, %s19
      %p30 = scmp.ge.s32.totalorder %s29, 2
      %s31 = scalar_select %p30, 0, %s29
      %s32 = ssub.s32 %s19, %s31
      %p33 = scmp.eq.s32.totalorder %s32, 0
      %s35 = sadd.s32 %s34, 1
      %s36 = scalar_select %p33, %s34, %s35
      %p39 = pneg %p33
      %p40 = scmp.eq.s32.totalorder %s12, 1
      %p41 = por %p39, %p40
      %p42 = scmp.ne.s32.totalorder %s34, %s37
      %p43 = scmp.eq.s32.totalorder %s12, 0
      %p44 = por %p42, %p43
      %p45 = scmp.ne.s32.totalorder %s34, %s37
      %p46 = scmp.eq.s32.totalorder %s17, 1
      %p47 = por %p45, %p46
      %p48 = scmp.ne.s32.totalorder %s37, %s38
      %p49 = scmp.eq.s32.totalorder %s17, 0
      %p50 = por %p48, %p49
      %p51 = scmp.ne.s32.totalorder %s37, %s38
      %p52 = scmp.eq.s32.totalorder %s18, 1
      %p53 = por %p51, %p52
      %p55 = scmp.ne.s32.totalorder %s38, %s54
      %p56 = scmp.eq.s32.totalorder %s18, 0
      %p57 = por %p55, %p56
      %s58 = ssub.s32 %s20, %s27
      %p59 = scmp.eq.s32.totalorder %s58, 0
      %s61 = sadd.s32 %s60, 1
      %s62 = scalar_select %p59, %s60, %s61
      %p65 = pneg %p59
      %p66 = scmp.eq.s32.totalorder %s12, 1
      %p67 = por %p65, %p66
      %p68 = scmp.ne.s32.totalorder %s60, %s63
      %p69 = scmp.eq.s32.totalorder %s12, 0
      %p70 = por %p68, %p69
      %p71 = scmp.ne.s32.totalorder %s60, %s63
      %p72 = scmp.eq.s32.totalorder %s17, 1
      %p73 = por %p71, %p72
      %p74 = scmp.ne.s32.totalorder %s63, %s64
      %p75 = scmp.eq.s32.totalorder %s17, 0
      %p76 = por %p74, %p75
      %p77 = scmp.ne.s32.totalorder %s63, %s64
      %p78 = scmp.eq.s32.totalorder %s18, 1
      %p79 = por %p77, %p78
      %p81 = scmp.ne.s32.totalorder %s64, %s80
      %p82 = scmp.eq.s32.totalorder %s18, 0
      %p83 = por %p81, %p82
      %s84 = ssub.s32 %s20, %s27
      %p85 = scmp.eq.s32.totalorder %s84, 0
      %s87 = sadd.s32 %s86, 1
      %s88 = scalar_select %p85, %s86, %s87
      %p91 = pneg %p85
      %p92 = scmp.eq.s32.totalorder %s12, 1
      %p93 = por %p91, %p92
      %p94 = scmp.ne.s32.totalorder %s86, %s89
      %p95 = scmp.eq.s32.totalorder %s12, 0
      %p96 = por %p94, %p95
      %p97 = scmp.ne.s32.totalorder %s86, %s89
      %p98 = scmp.eq.s32.totalorder %s17, 1
      %p99 = por %p97, %p98
      %p100 = scmp.ne.s32.totalorder %s89, %s90
      %p101 = scmp.eq.s32.totalorder %s17, 0
      %p102 = por %p100, %p101
      %p103 = scmp.ne.s32.totalorder %s89, %s90
      %p104 = scmp.eq.s32.totalorder %s18, 1
      %p105 = por %p103, %p104
      %p107 = scmp.ne.s32.totalorder %s90, %s106
      %p108 = scmp.eq.s32.totalorder %s18, 0
      %p109 = por %p107, %p108
      %s110 = ssub.s32 %s19, %s31
      %p111 = scmp.eq.s32.totalorder %s110, 0
      %s113 = sadd.s32 %s112, 1
      %s114 = scalar_select %p111, %s112, %s113
      %p117 = pneg %p111
      %p118 = scmp.eq.s32.totalorder %s12, 1
      %p119 = por %p117, %p118
      %p120 = scmp.ne.s32.totalorder %s112, %s115
      %p121 = scmp.eq.s32.totalorder %s12, 0
      %p122 = por %p120, %p121
      %p123 = scmp.ne.s32.totalorder %s112, %s115
      %p124 = scmp.eq.s32.totalorder %s17, 1
      %p125 = por %p123, %p124
      %p126 = scmp.ne.s32.totalorder %s115, %s116
      %p127 = scmp.eq.s32.totalorder %s17, 0
      %p128 = por %p126, %p127
      %p129 = scmp.ne.s32.totalorder %s115, %s116
      %p130 = scmp.eq.s32.totalorder %s18, 1
      %p131 = por %p129, %p130
      %p133 = scmp.ne.s32.totalorder %s116, %s132
      %p134 = scmp.eq.s32.totalorder %s18, 0
      %p135 = por %p133, %p134
      %p136 = scmp.le.s32.totalorder 1, %s12
      %p137 = scmp.lt.s32.totalorder %s12, 3
      %p138 = pnand %p136, %p137
      %p139 = pneg %p138
      // Predicated region
      $region9: #{tpu_custom_call.1} parent=5 // pred_check
        _
      $region10: #{tpu_custom_call.1} parent=5 // pred_check_branch
        %141 = sbr.rel (%p138) target = $region12
      $region11: #{tpu_custom_call.1} parent=5 // pred_region
        %s142 = ssub.s32 %s12, 1
        // Predicated region
        $region13: #{tpu_custom_call.1} parent=11 // pred_check
          %p143 = pneg %p76
        $region14: #{tpu_custom_call.1} parent=11 // pred_check_branch
          %145 = sbr.rel (%p143) target = $region16
        $region15: #{tpu_custom_call.1} parent=11 // pred_region
          %p146 = scmp.lt.s32.totalorder %s22, 0
          %s147 = scalar_select %p146, %s22, 0
          %s148 = smul.addr %s147, 8
          %s149 = scalar_lea.vmem %s1, %s148
        $region16: #{tpu_custom_call.1} parent=11 // pred_fallthru
          _
        // Predicated region
        $region17: #{tpu_custom_call.1} parent=11 // pred_check
          %p150 = pneg %p102
        $region18: #{tpu_custom_call.1} parent=11 // pred_check_branch
          %152 = sbr.rel (%p150) target = $region20
        $region19: #{tpu_custom_call.1} parent=11 // pred_region
          %s153 = smul.u32 8, %s22
          %p154 = scmp.lt.s32.totalorder %s153, 7
          %s155 = scalar_select %p154, %s153, 7
          %s156 = smul.addr %s155, 8
          %s157 = scalar_lea.vmem %s2, %s156
          %s158 = smul.u32 8, %s22
        $region20: #{tpu_custom_call.1} parent=11 // pred_fallthru
          _
      $region12: #{tpu_custom_call.1} parent=5 // pred_fallthru
        _
      %p159 = scmp.lt.s32.totalorder %s12, 2
      // Predicated region
      $region21: #{tpu_custom_call.1} parent=5 // pred_check
        %p160 = pneg %p159
      $region22: #{tpu_custom_call.1} parent=5 // pred_check_branch
        %162 = sbr.rel (%p160) target = $region24
      $region23: #{tpu_custom_call.1} parent=5 // pred_region
        // Predicated region
        $region25: #{tpu_custom_call.1} parent=23 // pred_check
          %p163 = pneg %p44
        $region26: #{tpu_custom_call.1} parent=23 // pred_check_branch
          %165 = sbr.rel (%p163) target = $region28
        $region27: #{tpu_custom_call.1} parent=23 // pred_region
          %p166 = scmp.lt.s32.totalorder %s19, 1
          %s167 = scalar_select %p166, %s19, 1
          %s168 = smul.addr %s167, 8
          %s169 = scalar_lea.vmem %s0, %s168
        $region28: #{tpu_custom_call.1} parent=23 // pred_fallthru
          _
      $region24: #{tpu_custom_call.1} parent=5 // pred_fallthru
        _
      %p170 = scmp.le.s32.totalorder 1, %s12
      %p171 = scmp.lt.s32.totalorder %s12, 3
      %p172 = pnand %p170, %p171
      %p173 = pneg %p172
      // Predicated region
      $region29: #{tpu_custom_call.1} parent=5 // pred_check
        _
      $region30: #{tpu_custom_call.1} parent=5 // pred_check_branch
        %175 = sbr.rel (%p172) target = $region32
      $region31: #{tpu_custom_call.1} parent=5 // pred_region
        %s176 = ssub.s32 %s12, 1
        %p177 = scmp.lt.s32.totalorder %s21, 1
        %s178 = scalar_select %p177, %s21, 1
        %s179 = smul.addr %s178, 8
        %s180 = scalar_lea.vmem %s0, %s179
        %p181 = pneg %p50
        %p182 = pneg %p47
        %p183 = scmp.lt.s32.totalorder %s22, 0
        %s184 = scalar_select %p183, %s22, 0
        %s185 = smul.addr %s184, 8
        %s186 = scalar_lea.vmem %s1, %s185
        %p187 = pneg %p76
        %p188 = pneg %p73
        %s189 = smul.u32 8, %s22
        %p190 = scmp.lt.s32.totalorder %s189, 7
        %s191 = scalar_select %p190, %s189, 7
        %s192 = smul.addr %s191, 8
        %s193 = scalar_lea.vmem %s2, %s192
        %p194 = pneg %p102
        %p195 = pneg %p99
        %p196 = pneg %p128
        %p197 = pneg %p125
        %s198 = sand.u32 %s115, 1
        %s199 = scalar_lea.sflag [#allocation4], %s198
        %s200 = sand.u32 %s115, 1
        %s201 = smul.addr %s200, 8
        %s202 = scalar_lea.vmem [#allocation3], %s201
        %p203 = scmp.lt.s32.totalorder %s21, 1
        %s204 = scalar_select %p203, %s21, 1
        %s205 = smul.addr %s204, 8
        %s206 = scalar_lea.vmem %s0, %s205
        %p207 = scmp.lt.s32.totalorder %s22, 0
        %s208 = scalar_select %p207, %s22, 0
        %s209 = smul.addr %s208, 8
        %s210 = scalar_lea.vmem %s1, %s209
        %s211 = smul.u32 8, %s22
        %p212 = scmp.lt.s32.totalorder %s211, 7
        %s213 = scalar_select %p212, %s211, 7
        %s214 = smul.addr %s213, 8
        %s215 = scalar_lea.vmem %s2, %s214
        %s216 = smul.u32 8, %s22
        %p217 = scmp.eq.s32.totalorder %s22, 0
        // Predicated region
        $region33: #{tpu_custom_call.1} parent=31 // pred_check
          %p218 = pneg %p217
        $region34: #{tpu_custom_call.1} parent=31 // pred_check_branch
          %220 = sbr.rel (%p218) target = $region36
        $region35: #{tpu_custom_call.1} parent=31 // pred_region
          %vm221 = vcmask 261120
          %222 = vst.msk [vmem:[#allocation2] sm:$0xff] %vm221, 0.0
        $region36: #{tpu_custom_call.1} parent=31 // pred_fallthru
          _
        %v223 = vld [vmem:[%s206] sm:$0xff]
        %v224 = vld [vmem:[%s210] sm:$0xff]
        %v225 = vld [vmem:[%s210 + $0x8] sm:$0xff]
        %v226 = vld [vmem:[%s210 + $0x10] sm:$0xff]
        %v227 = vld [vmem:[%s210 + $0x18] sm:$0xff]
        %vm228 = vcmask 261120
        %v230 = vsel %vm228, %v223, 0
        %232 = vmatprep.subr.mxu0 0.0
        %233 = vmatpush1.msra.mxu0 0.0
        %234 = vmatprep.subr.mxu0 0.0
        %235 = vmatpush1.msra.mxu0 0.0
        %236 = vmatprep.subr.mxu0 0.0
        %237 = vmatpush1.msra.mxu0 0.0
        %238 = vmatprep.subr.mxu0 0.0
        %239 = vmatpush1.msra.mxu0 0.0
        %240 = vmatprep.subr.mxu0 0.0
        %241 = vmatpush1.msra.mxu0 0.0
        %242 = vmatprep.subr.mxu0 0.0
        %243 = vmatpush1.msra.mxu0 0.0
        %244 = vmatprep.subr.mxu0 0.0
        %245 = vmatpush1.msra.mxu0 0.0
        %246 = vmatprep.subr.mxu0 0.0
        %247 = vmatpush1.msra.mxu0 0.0
        %248 = vmatprep.subr.mxu0 0.0
        %249 = vmatpush1.msra.mxu0 0.0
        %250 = vmatprep.subr.mxu0 0.0
        %251 = vmatpush1.msra.mxu0 0.0
        %252 = vmatprep.subr.mxu0 0.0
        %253 = vmatpush1.msra.mxu0 0.0
        %254 = vmatprep.subr.mxu0 0.0
        %255 = vmatpush1.msra.mxu0 0.0
        %256 = vmatprep.subr.mxu0 0.0
        %257 = vmatpush1.msra.mxu0 %v227
        %258 = vmatprep.subr.mxu0 0.0
        %259 = vmatpush1.msra.mxu0 %v226
        %260 = vmatprep.subr.mxu0 0.0
        %261 = vmatpush1.msra.mxu0 %v225
        %262 = vmatprep.subr.mxu0 0.0
        %263 = vmatpush1.msra.mxu0 %v224
        %264 = vmatprep.subr.mxu0 0.0
        %265 = vmatpush2.msra.mxu0 0.0
        %266 = vmatprep.subr.mxu0 0.0
        %267 = vmatpush2.msra.mxu0 0.0
        %268 = vmatprep.subr.mxu0 0.0
        %269 = vmatpush2.msra.mxu0 0.0
        %270 = vmatprep.subr.mxu0 0.0
        %271 = vmatpush2.msra.mxu0 0.0
        %272 = vmatprep.subr.mxu0 0.0
        %273 = vmatpush2.msra.mxu0 0.0
        %274 = vmatprep.subr.mxu0 0.0
        %275 = vmatpush2.msra.mxu0 0.0
        %276 = vmatprep.subr.mxu0 0.0
        %277 = vmatpush2.msra.mxu0 0.0
        %278 = vmatprep.subr.mxu0 0.0
        %279 = vmatpush2.msra.mxu0 0.0
        %280 = vmatprep.subr.mxu0 0.0
        %281 = vmatpush2.msra.mxu0 0.0
        %282 = vmatprep.subr.mxu0 0.0
        %283 = vmatpush2.msra.mxu0 0.0
        %284 = vmatprep.subr.mxu0 0.0
        %285 = vmatpush2.msra.mxu0 0.0
        %286 = vmatprep.subr.mxu0 0.0
        %287 = vmatpush2.msra.mxu0 0.0
        %288 = vmatprep.subr.mxu0 0.0
        %289 = vmatpush2.msra.mxu0 0.0
        %290 = vmatprep.subr.mxu0 0.0
        %291 = vmatpush2.msra.mxu0 0.0
        %292 = vmatprep.subr.mxu0 0.0
        %293 = vmatpush2.msra.mxu0 0.0
        %294 = vmatprep.subr.mxu0 0.0
        %295 = vmatpush2.msra.mxu0 0.0
        %296 = vmatprep.mubr.f32.mxu0 0.0
        %297 = vmatmul.mubr.f32.gmra.mxu0 %v230
        %v298 = vpop.f32.mrf.mxu0
        %v299 = vadd.f32 0.0, %v298
        %v300 = vpop.f32.mrf.mxu0
        %301 = vdwg.mxu0
        %v302 = vxor.u32 %v299, 2147483648
        %v303 = vmul.f32 %v302, 1.442695
        %v304 = vpow.pop %v303
        %v305 = vadd.f32 %v304, 1.0
        %v306 = vrcp.pop %v305
        %v307 = vmul.f32 1.0, %v306
        %v308 = vmul.f32 %v299, %v307
        %310 = vrot.lane.b32.xlu0 %v308, 64
        %v311 = vpop.permute.xlu0 %310
        %v313 = vmul.f32 %v299, %v311
        %v314 = vld [vmem:[#allocation2] sm:$0xff]
        %v315 = vld [vmem:[%s215] sm:$0xff]
        %v316 = vld [vmem:[%s215 + $0x8] sm:$0xff]
        %v317 = vld [vmem:[%s215 + $0x10] sm:$0xff]
        %v318 = vld [vmem:[%s215 + $0x18] sm:$0xff]
        %v319 = vld [vmem:[%s215 + $0x20] sm:$0xff]
        %v320 = vld [vmem:[%s215 + $0x28] sm:$0xff]
        %v321 = vld [vmem:[%s215 + $0x30] sm:$0xff]
        %v322 = vld [vmem:[%s215 + $0x38] sm:$0xff]
        %vm323 = vcmask 523264
        %v325 = vsel %vm323, %v313, 0
        %327 = vmatprep.subr.mxu0 0.0
        %328 = vmatpush1.msra.mxu0 0.0
        %329 = vmatprep.subr.mxu0 0.0
        %330 = vmatpush1.msra.mxu0 0.0
        %331 = vmatprep.subr.mxu0 0.0
        %332 = vmatpush1.msra.mxu0 0.0
        %333 = vmatprep.subr.mxu0 0.0
        %334 = vmatpush1.msra.mxu0 0.0
        %335 = vmatprep.subr.mxu0 0.0
        %336 = vmatpush1.msra.mxu0 0.0
        %337 = vmatprep.subr.mxu0 0.0
        %338 = vmatpush1.msra.mxu0 0.0
        %339 = vmatprep.subr.mxu0 0.0
        %340 = vmatpush1.msra.mxu0 0.0
        %341 = vmatprep.subr.mxu0 0.0
        %342 = vmatpush1.msra.mxu0 0.0
        %343 = vmatprep.subr.mxu0 0.0
        %344 = vmatpush1.msra.mxu0 %v322
        %345 = vmatprep.subr.mxu0 0.0
        %346 = vmatpush1.msra.mxu0 %v321
        %347 = vmatprep.subr.mxu0 0.0
        %348 = vmatpush1.msra.mxu0 %v320
        %349 = vmatprep.subr.mxu0 0.0
        %350 = vmatpush1.msra.mxu0 %v319
        %351 = vmatprep.subr.mxu0 0.0
        %352 = vmatpush1.msra.mxu0 %v318
        %353 = vmatprep.subr.mxu0 0.0
        %354 = vmatpush1.msra.mxu0 %v317
        %355 = vmatprep.subr.mxu0 0.0
        %356 = vmatpush1.msra.mxu0 %v316
        %357 = vmatprep.subr.mxu0 0.0
        %358 = vmatpush1.msra.mxu0 %v315
        %359 = vmatprep.subr.mxu0 0.0
        %360 = vmatpush2.msra.mxu0 0.0
        %361 = vmatprep.subr.mxu0 0.0
        %362 = vmatpush2.msra.mxu0 0.0
        %363 = vmatprep.subr.mxu0 0.0
        %364 = vmatpush2.msra.mxu0 0.0
        %365 = vmatprep.subr.mxu0 0.0
        %366 = vmatpush2.msra.mxu0 0.0
        %367 = vmatprep.subr.mxu0 0.0
        %368 = vmatpush2.msra.mxu0 0.0
        %369 = vmatprep.subr.mxu0 0.0
        %370 = vmatpush2.msra.mxu0 0.0
        %371 = vmatprep.subr.mxu0 0.0
        %372 = vmatpush2.msra.mxu0 0.0
        %373 = vmatprep.subr.mxu0 0.0
        %374 = vmatpush2.msra.mxu0 0.0
        %375 = vmatprep.subr.mxu0 0.0
        %376 = vmatpush2.msra.mxu0 0.0
        %377 = vmatprep.subr.mxu0 0.0
        %378 = vmatpush2.msra.mxu0 0.0
        %379 = vmatprep.subr.mxu0 0.0
        %380 = vmatpush2.msra.mxu0 0.0
        %381 = vmatprep.subr.mxu0 0.0
        %382 = vmatpush2.msra.mxu0 0.0
        %383 = vmatprep.subr.mxu0 0.0
        %384 = vmatpush2.msra.mxu0 0.0
        %385 = vmatprep.subr.mxu0 0.0
        %386 = vmatpush2.msra.mxu0 0.0
        %387 = vmatprep.subr.mxu0 0.0
        %388 = vmatpush2.msra.mxu0 0.0
        %389 = vmatprep.subr.mxu0 0.0
        %390 = vmatpush2.msra.mxu0 0.0
        %391 = vmatprep.mubr.f32.mxu0 0.0
        %392 = vmatmul.mubr.f32.gmra.mxu0 %v325
        %v393 = vpop.f32.mrf.mxu0
        %v394 = vadd.f32 0.0, %v393
        %v395 = vpop.f32.mrf.mxu0
        %396 = vdwg.mxu0
        %v397 = vadd.f32 %v314, %v394
        %398 = vst.msk [vmem:[#allocation2] sm:$0xff] %vm228, %v397
        // Predicated region
        $region37: #{tpu_custom_call.1} parent=31 // pred_check
          %p399 = pneg %p217
        $region38: #{tpu_custom_call.1} parent=31 // pred_check_branch
          %401 = sbr.rel (%p399) target = $region40
        $region39: #{tpu_custom_call.1} parent=31 // pred_region
          %v402 = vld [vmem:[#allocation2] sm:$0xff]
          %403 = vst.msk [vmem:[%s202] sm:$0xff] %vm228, %v402
        $region40: #{tpu_custom_call.1} parent=31 // pred_fallthru
          _
        %s404 = sand.u32 %s115, 1
        %s405 = scalar_lea.sflag [#allocation4], %s404
        %s406 = sand.u32 %s115, 1
        %s407 = smul.addr %s406, 8
        %s408 = scalar_lea.vmem [#allocation3], %s407
        // Predicated region
        $region41: #{tpu_custom_call.1} parent=31 // pred_check
          %p409 = pneg %p125
        $region42: #{tpu_custom_call.1} parent=31 // pred_check_branch
          %411 = sbr.rel (%p409) target = $region44
        $region43: #{tpu_custom_call.1} parent=31 // pred_region
          %s413 = ssub.s32 128, 128
          %414 = vsyncadd %s405, %s413
          %s415 = smul.addr %s21, 128
          %s416 = scalar_lea.hbm %s3, %s415
          %s418 = sshll.u32 %s408, 4
          %s419 = int_to_ptr.vmem [resolvable:$true] %s418
          %421 = dma.vmem_to_hbm [thread:$0]  %s419, 128, %s416, %s405
        $region44: #{tpu_custom_call.1} parent=31 // pred_fallthru
          _
      $region32: #{tpu_custom_call.1} parent=5 // pred_fallthru
        _
      %p422 = scmp.le.s32.totalorder 2, %s12
      // Predicated region
      $region45: #{tpu_custom_call.1} parent=5 // pred_check
        %p423 = pneg %p422
      $region46: #{tpu_custom_call.1} parent=5 // pred_check_branch
        %425 = sbr.rel (%p423) target = $region48
      $region47: #{tpu_custom_call.1} parent=5 // pred_region
        %s426 = ssub.s32 %s12, 2
        // Predicated region
        $region49: #{tpu_custom_call.1} parent=47 // pred_check
          %p427 = pneg %p131
        $region50: #{tpu_custom_call.1} parent=47 // pred_check_branch
          %429 = sbr.rel (%p427) target = $region52
        $region51: #{tpu_custom_call.1} parent=47 // pred_region
          %s430 = sand.u32 %s116, 1
          %s431 = scalar_lea.sflag [#allocation4], %s430
          %s432 = sand.u32 %s116, 1
          %s433 = smul.addr %s432, 8
          %s434 = scalar_lea.vmem [#allocation3], %s433
          %435 = dma.done %s431, 128
        $region52: #{tpu_custom_call.1} parent=47 // pred_fallthru
          _
      $region48: #{tpu_custom_call.1} parent=5 // pred_fallthru
        _
    $region6: #{tpu_custom_call.1} parent=1 // loop_footer
      %s16 = sadd.s32 1, %s12
    $region7: #{tpu_custom_call.1} parent=1 // loop_footer_branch
      %11 = sbr.rel target = $region3
    $region8: #{tpu_custom_call.1} parent=1 // loop_exit
      _
    %436 = vsyncpa [#allocation4], 1
    %s437 = scalar_lea.sflag [#allocation4], 1
    %438 = vsyncpa %s437, 1

</llo_original>
